<compile_context>
chip_gen: v7x
topology: tpu7x:2x2x1
jax: 0.10.0
libtpu: 0.0.40
codegen_flags: <defaults>
</compile_context>

<pallas_src>
import jax
import jax.numpy as jnp
from jax.experimental import pallas as pl
from jax.experimental.pallas import tpu as pltpu

STATE_DIM = 3
ACTION_DIM = 1
IN_DIM = STATE_DIM + ACTION_DIM   # 4
HIDDEN_DIM = 64
V2_DIM = 32

_LANE = 128

# Row offsets inside the packed (transposed) weight slab; every block starts
# on a multiple of 8 sublanes.  Columns hold the *input* features.
_R_W1 = 0      # w1^T  : rows   0:64   cols 0:4
_R_W2 = 64     # w2^T  : rows  64:128  cols 0:64
_R_WC = 128    # [wv1;wp]^T : rows 128:192 = wv1^T, row 192 = wp^T (cols 0:64)
_R_WV2 = 200   # wv2^T : rows 200:232  cols 0:64
_R_WV3 = 232   # wv3^T : row  232      cols 0:32   (rows 233:240 zero pad)
_W_ROWS = 240
_W_COLS = 128


def _round_up(x, m):
    return ((x + m - 1) // m) * m


def _phasic_kernel(x_ref, w_ref, b_ref, out_ref):
    """x_ref: (4, tb); w_ref: (240, 128); b_ref: (240, 1); out_ref: (2, tb)."""

    def mm(w, x):
        # Weight slab carries the matmul operand dtype (f32 or pre-cast bf16);
        # accumulate in f32 on the MXU.
        return jnp.dot(w, x.astype(w.dtype), preferred_element_type=jnp.float32)

    # nan -> 0 on the combined [state; action] slab (elementwise, f32 VPU).
    x = x_ref[...]                                         # (4, tb)
    x = jnp.where(jnp.isnan(x), 0.0, x)

    # ---- shared trunk ----------------------------------------------------
    w1 = w_ref[_R_W1:_R_W1 + HIDDEN_DIM, 0:IN_DIM]         # (64, 4)
    b1 = b_ref[_R_W1:_R_W1 + HIDDEN_DIM, :]                # (64, 1)
    h = jnp.maximum(mm(w1, x) + b1, 0.0)                   # (64, tb) ReLU
    # (Dropout(0.1) is identity in eval mode.)

    w2 = w_ref[_R_W2:_R_W2 + HIDDEN_DIM, 0:HIDDEN_DIM]     # (64, 64)
    b2 = b_ref[_R_W2:_R_W2 + HIDDEN_DIM, :]                # (64, 1)
    h = jnp.maximum(mm(w2, h) + b2, 0.0)                   # (64, tb)

    # ---- fused [value-layer-1 ; policy] head -------------------------------
    # Rows 0:64 = wv1^T, row 64 = wp^T, rows 65:72 zero pad (sublane-aligned).
    wc = w_ref[_R_WC:_R_WC + 72, 0:HIDDEN_DIM]             # (72, 64)
    bc = b_ref[_R_WC:_R_WC + 72, :]                        # (72, 1)
    pv = mm(wc, h) + bc                                    # (72, tb)
    policy = pv[HIDDEN_DIM:HIDDEN_DIM + 1, :]              # (1, tb)
    v = pv[0:HIDDEN_DIM, :]                                # (64, tb)
    v = jnp.where(v > 0.0, v, 0.01 * v)                    # LeakyReLU

    # ---- value head, remaining layers --------------------------------------
    wv2 = w_ref[_R_WV2:_R_WV2 + V2_DIM, 0:HIDDEN_DIM]      # (32, 64)
    bv2 = b_ref[_R_WV2:_R_WV2 + V2_DIM, :]                 # (32, 1)
    v = mm(wv2, v) + bv2                                   # (32, tb)
    v = jnp.where(v > 0.0, v, 0.01 * v)

    wv3 = w_ref[_R_WV3:_R_WV3 + 8, 0:V2_DIM]               # (8, 32), rows 1:8 zero
    bv3 = b_ref[_R_WV3:_R_WV3 + 8, :]                      # (8, 1)
    value = (mm(wv3, v) + bv3)[0:1, :]                     # (1, tb)

    # Lane-dense output: two direct full-width row stores.
    out_ref[0:1, :] = policy
    out_ref[1:2, :] = value


def pack_params(params, dtype=jnp.float32):
    """Pack all weights (transposed) into one (240,128) slab + (240,1) f32 biases.

    Pass dtype=jnp.bfloat16 to pre-cast the weight slab once for bf16 MXU
    operands (v6e/v7x fast path); biases always stay f32.
    """
    W = jnp.zeros((_W_ROWS, _W_COLS), jnp.float32)
    W = W.at[_R_W1:_R_W1 + HIDDEN_DIM, 0:IN_DIM].set(params["w1"].T)
    W = W.at[_R_W2:_R_W2 + HIDDEN_DIM, 0:HIDDEN_DIM].set(params["w2"].T)
    W = W.at[_R_WC:_R_WC + HIDDEN_DIM, 0:HIDDEN_DIM].set(params["wv1"].T)
    W = W.at[_R_WC + HIDDEN_DIM:_R_WC + HIDDEN_DIM + 1, 0:HIDDEN_DIM].set(
        params["wp"].T)
    W = W.at[_R_WV2:_R_WV2 + V2_DIM, 0:HIDDEN_DIM].set(params["wv2"].T)
    W = W.at[_R_WV3:_R_WV3 + 1, 0:V2_DIM].set(params["wv3"].T)

    Bv = jnp.zeros((_W_ROWS, 1), jnp.float32)
    Bv = Bv.at[_R_W1:_R_W1 + HIDDEN_DIM, 0].set(params["b1"].reshape(-1))
    Bv = Bv.at[_R_W2:_R_W2 + HIDDEN_DIM, 0].set(params["b2"].reshape(-1))
    Bv = Bv.at[_R_WC:_R_WC + HIDDEN_DIM, 0].set(params["bv1"].reshape(-1))
    Bv = Bv.at[_R_WC + HIDDEN_DIM, 0].set(params["bp"].reshape(-1)[0])
    Bv = Bv.at[_R_WV2:_R_WV2 + V2_DIM, 0].set(params["bv2"].reshape(-1))
    Bv = Bv.at[_R_WV3, 0].set(params["bv3"].reshape(-1)[0])
    return W.astype(dtype), Bv


def _choose_tile(B, tile_b):
    """Batch tile (lane dim): multiple of 128 (or == B), >=2 steps when B>=256."""
    if B < 2 * _LANE:
        return B                                   # single block == full dim
    tb = min(_round_up(tile_b, _LANE), _round_up(pl.cdiv(B, 2), _LANE))
    return max(tb, _LANE)


def phasic_policy_forward(state, action, w_slab, b_slab, *, tile_b=4096):
    """state: (B,3), action: (B,1) -> (policy (B,1), value (B,1))."""
    B = state.shape[0]
    # Batch-on-lanes input slab: rows 0:3 = state^T, row 3 = action^T.
    x_t = jnp.concatenate(
        [state.astype(jnp.float32), action.astype(jnp.float32)], axis=-1).T  # (4,B)

    tb = _choose_tile(B, tile_b)
    grid = (pl.cdiv(B, tb),)

    flops = 2 * B * (IN_DIM * HIDDEN_DIM + HIDDEN_DIM * HIDDEN_DIM
                     + HIDDEN_DIM * 72 + HIDDEN_DIM * V2_DIM + V2_DIM * 8)
    w_bytes = int(w_slab.size) * jnp.dtype(w_slab.dtype).itemsize
    b_bytes = int(b_slab.size) * 4
    bytes_accessed = B * (IN_DIM + 2) * 4 + w_bytes + b_bytes
    cost = pl.CostEstimate(flops=flops, transcendentals=0,
                           bytes_accessed=bytes_accessed)

    # Explicit VMEM budget: double-buffered I/O tiles (8-sublane padded) +
    # resident slabs (lane-padded, x2 pipeline buffers) + generous headroom
    # for the live (feat, tb) f32 activations.
    io_bytes = 2 * 2 * (8 * tb * 4)
    slab_bytes = 2 * (_W_ROWS * _W_COLS * jnp.dtype(w_slab.dtype).itemsize
                      + _W_ROWS * _LANE * 4)
    act_bytes = 512 * tb * 4
    vmem_limit = int(min(48 << 20, max(16 << 20, io_bytes + slab_bytes + act_bytes)))

    out = pl.pallas_call(
        _phasic_kernel,
        out_shape=jax.ShapeDtypeStruct((2, B), jnp.float32),
        grid_spec=pltpu.PrefetchScalarGridSpec(
            num_scalar_prefetch=0,
            grid=grid,
            in_specs=[
                pl.BlockSpec((IN_DIM, tb), lambda i: (0, i)),
                # Weight / bias slabs: full arrays, VMEM-resident across steps.
                pl.BlockSpec((_W_ROWS, _W_COLS), lambda i: (0, 0)),
                pl.BlockSpec((_W_ROWS, 1), lambda i: (0, 0)),
            ],
            out_specs=pl.BlockSpec((2, tb), lambda i: (0, i)),
        ),
        compiler_params=pltpu.CompilerParams(
            dimension_semantics=("parallel",),
            vmem_limit_bytes=vmem_limit,
        ),
        cost_estimate=cost,
    )(x_t, w_slab, b_slab)

    return out[0:1, :].T, out[1:2, :].T


def init_params(key):
    """Deterministic PyTorch-Linear-style init; weights stored as (in, out)."""
    dims = [
        ("w1", "b1", STATE_DIM + ACTION_DIM, HIDDEN_DIM),
        ("w2", "b2", HIDDEN_DIM, HIDDEN_DIM),
        ("wp", "bp", HIDDEN_DIM, 1),
        ("wv1", "bv1", HIDDEN_DIM, 64),
        ("wv2", "bv2", 64, 32),
        ("wv3", "bv3", 32, 1),
    ]
    params = {}
    keys = jax.random.split(key, 2 * len(dims))
    for i, (wname, bname, fan_in, fan_out) in enumerate(dims):
        bound = 1.0 / (fan_in ** 0.5)
        params[wname] = jax.random.uniform(
            keys[2 * i], (fan_in, fan_out), jnp.float32, -bound, bound)
        params[bname] = jax.random.uniform(
            keys[2 * i + 1], (1, fan_out), jnp.float32, -bound, bound)
    return params


def _reference_forward(state, action, params):
    """Pure-JAX reference mirroring the PyTorch module (eval mode)."""
    s = jnp.where(jnp.isnan(state), 0.0, state)
    a = jnp.where(jnp.isnan(action), 0.0, action)
    x = jnp.concatenate([s, a], axis=-1)
    h = jnp.maximum(x @ params["w1"] + params["b1"], 0.0)
    h = jnp.maximum(h @ params["w2"] + params["b2"], 0.0)
    policy = h @ params["wp"] + params["bp"]
    v = h @ params["wv1"] + params["bv1"]
    v = jnp.where(v > 0, v, 0.01 * v)
    v = v @ params["wv2"] + params["bv2"]
    v = jnp.where(v > 0, v, 0.01 * v)
    v = v @ params["wv3"] + params["bv3"]
    return policy, v


if __name__ == "__main__":
    key = jax.random.PRNGKey(0)
    pkey, skey, akey = jax.random.split(key, 3)

    params = init_params(pkey)
    w_slab, b_slab = pack_params(params)   # one-time transposed parameter packing

    B = 256
    state = jax.random.normal(skey, (B, STATE_DIM), jnp.float32)
    action = jax.random.normal(akey, (B, ACTION_DIM), jnp.float32)
    # inject NaNs to exercise the nan-masking path
    state = state.at[0, 1].set(jnp.nan)
    action = action.at[3, 0].set(jnp.nan)

    # tile_b=128 -> 2 pipelined grid steps (also exercises the v7x 2-core split)
    policy, value = phasic_policy_forward(state, action, w_slab, b_slab,
                                          tile_b=128)
    policy = jax.block_until_ready(policy)
    value = jax.block_until_ready(value)

    ref_policy, ref_value = _reference_forward(state, action, params)
    assert policy.shape == (B, 1) and value.shape == (B, 1)
    assert jnp.allclose(policy, ref_policy, atol=1e-5, rtol=1e-5)
    assert jnp.allclose(value, ref_value, atol=1e-5, rtol=1e-5)

    print("KERNEL_OK")
</pallas_src>

<mosaic_0001>
module attributes {stable_mosaic.version = 11 : i64} {
  func.func @_phasic_kernel(%arg0: i32, %arg1: memref<4x128xf32, #tpu.memory_space<vmem>>, %arg2: memref<240x128xf32, #tpu.memory_space<vmem>>, %arg3: memref<240x1xf32, #tpu.memory_space<vmem>>, %arg4: memref<2x128xf32, #tpu.memory_space<vmem>>) attributes {dimension_semantics = [#tpu.dimension_semantics<parallel>], iteration_bounds = array<i64: 2>, scalar_prefetch = 0 : i64, scratch_operands = 0 : i64, tpu.core_type = #tpu.core_type<tc>, window_params = [{transform_indices = @transform_0, window_bounds = array<i64: 4, 128>}, {pipeline_mode = #tpu.pipeline_mode<synchronous>, transform_indices = @transform_1, window_bounds = array<i64: 240, 128>}, {pipeline_mode = #tpu.pipeline_mode<synchronous>, transform_indices = @transform_2, window_bounds = array<i64: 240, 1>}, {transform_indices = @transform_3, window_bounds = array<i64: 2, 128>}]} {
    %c0 = arith.constant 0 : index
    %c0_0 = arith.constant 0 : index
    %0 = vector.load %arg1[%c0, %c0_0] : memref<4x128xf32, #tpu.memory_space<vmem>>, vector<4x128xf32>
    %1 = arith.cmpf one, %0, %0 : vector<4x128xf32>
    %cst = arith.constant 0.000000e+00 : f32
    %2 = vector.broadcast %cst : f32 to vector<4x128xf32>
    %3 = arith.select %1, %2, %0 : vector<4x128xi1>, vector<4x128xf32>
    %c0_1 = arith.constant 0 : index
    %c0_2 = arith.constant 0 : index
    %4 = vector.load %arg2[%c0_1, %c0_2] : memref<240x128xf32, #tpu.memory_space<vmem>>, vector<64x4xf32>
    %c0_3 = arith.constant 0 : index
    %c0_4 = arith.constant 0 : index
    %5 = vector.load %arg3[%c0_3, %c0_4] : memref<240x1xf32, #tpu.memory_space<vmem>>, vector<64x1xf32>
    %cst_5 = arith.constant dense<0.000000e+00> : vector<64x128xf32>
    %6 = tpu.matmul %4, %3, %cst_5 {dimension_numbers = #tpu.dot_dimension_numbers<[1], [0], [0], [1], [0, 0, 1, 1], [], []>} : vector<64x4xf32>, vector<4x128xf32>, vector<64x128xf32> -> vector<64x128xf32>
    %7 = vector.broadcast %5 : vector<64x1xf32> to vector<64x128xf32>
    %8 = arith.addf %6, %7 : vector<64x128xf32>
    %cst_6 = arith.constant 0.000000e+00 : f32
    %9 = vector.broadcast %cst_6 : f32 to vector<64x128xf32>
    %10 = arith.maximumf %8, %9 : vector<64x128xf32>
    %c64 = arith.constant 64 : index
    %c0_7 = arith.constant 0 : index
    %11 = vector.load %arg2[%c64, %c0_7] : memref<240x128xf32, #tpu.memory_space<vmem>>, vector<64x64xf32>
    %c64_8 = arith.constant 64 : index
    %c0_9 = arith.constant 0 : index
    %12 = vector.load %arg3[%c64_8, %c0_9] : memref<240x1xf32, #tpu.memory_space<vmem>>, vector<64x1xf32>
    %cst_10 = arith.constant dense<0.000000e+00> : vector<64x128xf32>
    %13 = tpu.matmul %11, %10, %cst_10 {dimension_numbers = #tpu.dot_dimension_numbers<[1], [0], [0], [1], [0, 0, 1, 1], [], []>} : vector<64x64xf32>, vector<64x128xf32>, vector<64x128xf32> -> vector<64x128xf32>
    %14 = vector.broadcast %12 : vector<64x1xf32> to vector<64x128xf32>
    %15 = arith.addf %13, %14 : vector<64x128xf32>
    %cst_11 = arith.constant 0.000000e+00 : f32
    %16 = vector.broadcast %cst_11 : f32 to vector<64x128xf32>
    %17 = arith.maximumf %15, %16 : vector<64x128xf32>
    %c128 = arith.constant 128 : index
    %c0_12 = arith.constant 0 : index
    %18 = vector.load %arg2[%c128, %c0_12] : memref<240x128xf32, #tpu.memory_space<vmem>>, vector<72x64xf32>
    %c128_13 = arith.constant 128 : index
    %c0_14 = arith.constant 0 : index
    %19 = vector.load %arg3[%c128_13, %c0_14] : memref<240x1xf32, #tpu.memory_space<vmem>>, vector<72x1xf32>
    %cst_15 = arith.constant dense<0.000000e+00> : vector<72x128xf32>
    %20 = tpu.matmul %18, %17, %cst_15 {dimension_numbers = #tpu.dot_dimension_numbers<[1], [0], [0], [1], [0, 0, 1, 1], [], []>} : vector<72x64xf32>, vector<64x128xf32>, vector<72x128xf32> -> vector<72x128xf32>
    %21 = vector.broadcast %19 : vector<72x1xf32> to vector<72x128xf32>
    %22 = arith.addf %20, %21 : vector<72x128xf32>
    %23 = vector.extract_strided_slice %22 {offsets = [64, 0], sizes = [1, 128], strides = [1, 1]} : vector<72x128xf32> to vector<1x128xf32>
    %24 = vector.extract_strided_slice %22 {offsets = [0, 0], sizes = [64, 128], strides = [1, 1]} : vector<72x128xf32> to vector<64x128xf32>
    %cst_16 = arith.constant 0.000000e+00 : f32
    %25 = vector.broadcast %cst_16 : f32 to vector<64x128xf32>
    %26 = arith.cmpf ogt, %24, %25 : vector<64x128xf32>
    %cst_17 = arith.constant 0.00999999977 : f32
    %27 = vector.broadcast %cst_17 : f32 to vector<64x128xf32>
    %28 = arith.mulf %27, %24 : vector<64x128xf32>
    %29 = arith.select %26, %24, %28 : vector<64x128xi1>, vector<64x128xf32>
    %c200 = arith.constant 200 : index
    %c0_18 = arith.constant 0 : index
    %30 = vector.load %arg2[%c200, %c0_18] : memref<240x128xf32, #tpu.memory_space<vmem>>, vector<32x64xf32>
    %c200_19 = arith.constant 200 : index
    %c0_20 = arith.constant 0 : index
    %31 = vector.load %arg3[%c200_19, %c0_20] : memref<240x1xf32, #tpu.memory_space<vmem>>, vector<32x1xf32>
    %cst_21 = arith.constant dense<0.000000e+00> : vector<32x128xf32>
    %32 = tpu.matmul %30, %29, %cst_21 {dimension_numbers = #tpu.dot_dimension_numbers<[1], [0], [0], [1], [0, 0, 1, 1], [], []>} : vector<32x64xf32>, vector<64x128xf32>, vector<32x128xf32> -> vector<32x128xf32>
    %33 = vector.broadcast %31 : vector<32x1xf32> to vector<32x128xf32>
    %34 = arith.addf %32, %33 : vector<32x128xf32>
    %cst_22 = arith.constant 0.000000e+00 : f32
    %35 = vector.broadcast %cst_22 : f32 to vector<32x128xf32>
    %36 = arith.cmpf ogt, %34, %35 : vector<32x128xf32>
    %cst_23 = arith.constant 0.00999999977 : f32
    %37 = vector.broadcast %cst_23 : f32 to vector<32x128xf32>
    %38 = arith.mulf %37, %34 : vector<32x128xf32>
    %39 = arith.select %36, %34, %38 : vector<32x128xi1>, vector<32x128xf32>
    %c232 = arith.constant 232 : index
    %c0_24 = arith.constant 0 : index
    %40 = vector.load %arg2[%c232, %c0_24] : memref<240x128xf32, #tpu.memory_space<vmem>>, vector<8x32xf32>
    %c232_25 = arith.constant 232 : index
    %c0_26 = arith.constant 0 : index
    %41 = vector.load %arg3[%c232_25, %c0_26] : memref<240x1xf32, #tpu.memory_space<vmem>>, vector<8x1xf32>
    %cst_27 = arith.constant dense<0.000000e+00> : vector<8x128xf32>
    %42 = tpu.matmul %40, %39, %cst_27 {dimension_numbers = #tpu.dot_dimension_numbers<[1], [0], [0], [1], [0, 0, 1, 1], [], []>} : vector<8x32xf32>, vector<32x128xf32>, vector<8x128xf32> -> vector<8x128xf32>
    %43 = vector.broadcast %41 : vector<8x1xf32> to vector<8x128xf32>
    %44 = arith.addf %42, %43 : vector<8x128xf32>
    %45 = vector.extract_strided_slice %44 {offsets = [0, 0], sizes = [1, 128], strides = [1, 1]} : vector<8x128xf32> to vector<1x128xf32>
    %c0_28 = arith.constant 0 : index
    %c0_29 = arith.constant 0 : index
    %46 = vector.load %arg4[%c0_28, %c0_29] : memref<2x128xf32, #tpu.memory_space<vmem>>, vector<1x128xf32>
    tpu.vector_store %arg4[%c0_28, %c0_29], %23 {strides = array<i32>} : memref<2x128xf32, #tpu.memory_space<vmem>>, vector<1x128xf32>,
    %c1 = arith.constant 1 : index
    %c0_30 = arith.constant 0 : index
    %47 = vector.load %arg4[%c1, %c0_30] : memref<2x128xf32, #tpu.memory_space<vmem>>, vector<1x128xf32>
    tpu.vector_store %arg4[%c1, %c0_30], %45 {strides = array<i32>} : memref<2x128xf32, #tpu.memory_space<vmem>>, vector<1x128xf32>,
    return
  }
  func.func @transform_0(%arg0: i32) -> (i32, i32) {
    %c0_i32 = arith.constant 0 : i32
    %c0_i32_0 = arith.constant 0 : i32
    return %c0_i32, %arg0 : i32, i32
  }
  func.func @transform_1(%arg0: i32) -> (i32, i32) {
    %c0_i32 = arith.constant 0 : i32
    %c0_i32_0 = arith.constant 0 : i32
    %c0_i32_1 = arith.constant 0 : i32
    return %c0_i32, %c0_i32_0 : i32, i32
  }
  func.func @transform_2(%arg0: i32) -> (i32, i32) {
    %c0_i32 = arith.constant 0 : i32
    %c0_i32_0 = arith.constant 0 : i32
    %c0_i32_1 = arith.constant 0 : i32
    return %c0_i32, %c0_i32_0 : i32, i32
  }
  func.func @transform_3(%arg0: i32) -> (i32, i32) {
    %c0_i32 = arith.constant 0 : i32
    %c0_i32_0 = arith.constant 0 : i32
    return %c0_i32, %arg0 : i32, i32
  }
}

</mosaic_0001>

<llo_original>
// kernel: tpu_custom_call.1
$region0: #{tpu_custom_call.1}
  #allocation0 [shape = 'u32[]', space=smem, size = 0x4, offset = 0x4, fixed_abs, tag = 'smem constant byte address 0x4 - core index']
  #allocation1 [shape = 'u32[144,128]{1,0:T(1,128)}', space=vmem, size = 0x12000, scoped, tag = 'internal scratch']
  %s0 = inlined_call_operand.hbm [shape: f32[4,256], index: 0, kind: input, shape index: {}]
  %s1 = inlined_call_operand.vmem [shape: f32[240,128], index: 1, kind: input, shape index: {}]
  %s2 = inlined_call_operand.vmem [shape: f32[240,1], index: 2, kind: input, shape index: {}]
  %s3 = inlined_call_operand.hbm [shape: f32[2,256], index: 3, kind: output, shape index: {}]
  %s4 = sld [smem:[#allocation0]]
  $region49: #{tpu_custom_call.1} parent=0
    _
  %s6 = ssub.s32 1, %s4
  %s7 = scalar_select 0, %s6, %s4
  $region1: #{tpu_custom_call.1} parent=0
    #allocation2 [shape = 'u8[4096]{0}', space=vmem, size = 0x1000, scoped, tag = 'input window, operand 0']
    #allocation3 [shape = 's32[2]{0}', space=sflag, size = 0x8, scoped, tag = 'scoped memory for tpu_custom_call.1']
    #allocation4 [shape = 's32[2]{0}', space=sflag, size = 0x8, scoped, tag = 'scoped memory for tpu_custom_call.1']
    #allocation5 [shape = 'u8[2048]{0}', space=vmem, size = 0x800, scoped, tag = 'output window, operand 0']
    %8 = vsyncpa [#allocation3], 0
    %s9 = scalar_lea.sflag [#allocation3], 1
    %10 = vsyncpa %s9, 0
    %11 = vsyncpa [#allocation4], 0
    %s12 = scalar_lea.sflag [#allocation4], 1
    %13 = vsyncpa %s12, 0
    loop: start=0, step=1, limit=4
    $region2: #{tpu_custom_call.1} parent=1 // loop_pre_header
      _
    $region3: #{tpu_custom_call.1} parent=1 // loop_header
      %s15 = sphi 0, %s19
      %p16 = scmp.ge.s32.totalorder %s15, 4
      %s25 = sphi 0, %s27
      %s28 = sphi 0, %s25
      %s29 = sphi 0, %s28
      %s45 = sphi 0, %s29
      %s49 = sphi 0, %s49
      %s51 = sphi 0, %s49
      %s52 = sphi 0, %s51
      %s66 = sphi 0, %s52
      %s70 = sphi 0, %s70
      %s72 = sphi 0, %s70
      %s73 = sphi 0, %s72
      %s87 = sphi 0, %s73
      %s93 = sphi 0, %s95
      %s96 = sphi 0, %s93
      %s97 = sphi 0, %s96
      %s113 = sphi 0, %s97
    $region4: #{tpu_custom_call.1} parent=1 // loop_header_branch
      %18 = sbr.rel (%p16) target = $region8
    $region5: #{tpu_custom_call.1} parent=1 // loop_body
      %s20 = ssub.s32 %s15, 1
      %s21 = ssub.s32 %s15, 2
      %s22 = sadd.s32 %s15, 1
      %s23 = ssub.s32 %s15, %s22
      %p24 = scmp.eq.s32.totalorder %s23, 0
      %s26 = sadd.s32 %s25, 1
      %s27 = scalar_select %p24, %s25, %s26
      %p30 = pneg %p24
      %p31 = scmp.eq.s32.totalorder %s15, 1
      %p32 = por %p30, %p31
      %p33 = scmp.ne.s32.totalorder %s25, %s28
      %p34 = scmp.eq.s32.totalorder %s15, 0
      %p35 = por %p33, %p34
      %p36 = scmp.ne.s32.totalorder %s25, %s28
      %p37 = scmp.eq.s32.totalorder %s20, 1
      %p38 = por %p36, %p37
      %p39 = scmp.ne.s32.totalorder %s28, %s29
      %p40 = scmp.eq.s32.totalorder %s20, 0
      %p41 = por %p39, %p40
      %p42 = scmp.ne.s32.totalorder %s28, %s29
      %p43 = scmp.eq.s32.totalorder %s21, 1
      %p44 = por %p42, %p43
      %p46 = scmp.ne.s32.totalorder %s29, %s45
      %p47 = scmp.eq.s32.totalorder %s21, 0
      %p48 = por %p46, %p47
      %s50 = sadd.s32 %s49, 1
      %p53 = scmp.eq.s32.totalorder %s15, 1
      %p54 = scmp.ne.s32.totalorder %s49, %s51
      %p55 = scmp.eq.s32.totalorder %s15, 0
      %p56 = por %p54, %p55
      %p57 = scmp.ne.s32.totalorder %s49, %s51
      %p58 = scmp.eq.s32.totalorder %s20, 1
      %p59 = por %p57, %p58
      %p60 = scmp.ne.s32.totalorder %s51, %s52
      %p61 = scmp.eq.s32.totalorder %s20, 0
      %p62 = por %p60, %p61
      %p63 = scmp.ne.s32.totalorder %s51, %s52
      %p64 = scmp.eq.s32.totalorder %s21, 1
      %p65 = por %p63, %p64
      %p67 = scmp.ne.s32.totalorder %s52, %s66
      %p68 = scmp.eq.s32.totalorder %s21, 0
      %p69 = por %p67, %p68
      %s71 = sadd.s32 %s70, 1
      %p74 = scmp.eq.s32.totalorder %s15, 1
      %p75 = scmp.ne.s32.totalorder %s70, %s72
      %p76 = scmp.eq.s32.totalorder %s15, 0
      %p77 = por %p75, %p76
      %p78 = scmp.ne.s32.totalorder %s70, %s72
      %p79 = scmp.eq.s32.totalorder %s20, 1
      %p80 = por %p78, %p79
      %p81 = scmp.ne.s32.totalorder %s72, %s73
      %p82 = scmp.eq.s32.totalorder %s20, 0
      %p83 = por %p81, %p82
      %p84 = scmp.ne.s32.totalorder %s72, %s73
      %p85 = scmp.eq.s32.totalorder %s21, 1
      %p86 = por %p84, %p85
      %p88 = scmp.ne.s32.totalorder %s73, %s87
      %p89 = scmp.eq.s32.totalorder %s21, 0
      %p90 = por %p88, %p89
      %s91 = ssub.s32 %s15, %s22
      %p92 = scmp.eq.s32.totalorder %s91, 0
      %s94 = sadd.s32 %s93, 1
      %s95 = scalar_select %p92, %s93, %s94
      %p98 = pneg %p92
      %p99 = scmp.eq.s32.totalorder %s15, 1
      %p100 = por %p98, %p99
      %p101 = scmp.ne.s32.totalorder %s93, %s96
      %p102 = scmp.eq.s32.totalorder %s15, 0
      %p103 = por %p101, %p102
      %p104 = scmp.ne.s32.totalorder %s93, %s96
      %p105 = scmp.eq.s32.totalorder %s20, 1
      %p106 = por %p104, %p105
      %p107 = scmp.ne.s32.totalorder %s96, %s97
      %p108 = scmp.eq.s32.totalorder %s20, 0
      %p109 = por %p107, %p108
      %p110 = scmp.ne.s32.totalorder %s96, %s97
      %p111 = scmp.eq.s32.totalorder %s21, 1
      %p112 = por %p110, %p111
      %p114 = scmp.ne.s32.totalorder %s97, %s113
      %p115 = scmp.eq.s32.totalorder %s21, 0
      %p116 = por %p114, %p115
      %p117 = scmp.le.s32.totalorder 1, %s15
      %p118 = scmp.lt.s32.totalorder %s15, 3
      %p119 = pnand %p117, %p118
      %p120 = pneg %p119
      // Predicated region
      $region9: #{tpu_custom_call.1} parent=5 // pred_check
        _
      $region10: #{tpu_custom_call.1} parent=5 // pred_check_branch
        %122 = sbr.rel (%p119) target = $region12
      $region11: #{tpu_custom_call.1} parent=5 // pred_region
        %s123 = ssub.s32 %s15, 1
        // Predicated region
        $region13: #{tpu_custom_call.1} parent=11 // pred_check
          %p124 = pneg %p62
        $region14: #{tpu_custom_call.1} parent=11 // pred_check_branch
          %126 = sbr.rel (%p124) target = $region16
        $region15: #{tpu_custom_call.1} parent=11 // pred_region
          _
        $region16: #{tpu_custom_call.1} parent=11 // pred_fallthru
          _
        // Predicated region
        $region17: #{tpu_custom_call.1} parent=11 // pred_check
          %p127 = pneg %p83
        $region18: #{tpu_custom_call.1} parent=11 // pred_check_branch
          %129 = sbr.rel (%p127) target = $region20
        $region19: #{tpu_custom_call.1} parent=11 // pred_region
          _
        $region20: #{tpu_custom_call.1} parent=11 // pred_fallthru
          _
      $region12: #{tpu_custom_call.1} parent=5 // pred_fallthru
        _
      %p130 = scmp.lt.s32.totalorder %s15, 2
      // Predicated region
      $region21: #{tpu_custom_call.1} parent=5 // pred_check
        %p131 = pneg %p130
      $region22: #{tpu_custom_call.1} parent=5 // pred_check_branch
        %133 = sbr.rel (%p131) target = $region24
      $region23: #{tpu_custom_call.1} parent=5 // pred_region
        // Predicated region
        $region25: #{tpu_custom_call.1} parent=23 // pred_check
          %p134 = pneg %p35
        $region26: #{tpu_custom_call.1} parent=23 // pred_check_branch
          %136 = sbr.rel (%p134) target = $region28
        $region27: #{tpu_custom_call.1} parent=23 // pred_region
          %s137 = sand.u32 %s25, 1
          %s138 = scalar_lea.sflag [#allocation3], %s137
          %s139 = sand.u32 %s25, 1
          %s140 = smul.addr %s139, 4
          %s141 = scalar_lea.vmem [#allocation2], %s140
          %s143 = ssub.s32 64, 64
          %144 = vsyncadd %s138, %s143
          %s145 = smul.addr %s15, 64
          %s146 = scalar_lea.hbm %s0, %s145
          %s148 = sshll.u32 %s141, 4
          %s149 = int_to_ptr.vmem [resolvable:$true] %s148
          %151 = dma.hbm_to_vmem [thread:$0]  %s146, 64, %s149, %s138
        $region28: #{tpu_custom_call.1} parent=23 // pred_fallthru
          _
      $region24: #{tpu_custom_call.1} parent=5 // pred_fallthru
        _
      %p152 = scmp.le.s32.totalorder 1, %s15
      %p153 = scmp.lt.s32.totalorder %s15, 3
      %p154 = pnand %p152, %p153
      %p155 = pneg %p154
      // Predicated region
      $region29: #{tpu_custom_call.1} parent=5 // pred_check
        _
      $region30: #{tpu_custom_call.1} parent=5 // pred_check_branch
        %157 = sbr.rel (%p154) target = $region32
      $region31: #{tpu_custom_call.1} parent=5 // pred_region
        %s158 = ssub.s32 %s15, 1
        %s159 = sand.u32 %s28, 1
        %s160 = scalar_lea.sflag [#allocation3], %s159
        %s161 = sand.u32 %s28, 1
        %s162 = smul.addr %s161, 4
        %s163 = scalar_lea.vmem [#allocation2], %s162
        // Predicated region
        $region33: #{tpu_custom_call.1} parent=31 // pred_check
          %p164 = pneg %p41
        $region34: #{tpu_custom_call.1} parent=31 // pred_check_branch
          %166 = sbr.rel (%p164) target = $region36
        $region35: #{tpu_custom_call.1} parent=31 // pred_region
          %167 = dma.done %s160, 64
        $region36: #{tpu_custom_call.1} parent=31 // pred_fallthru
          _
        %s168 = sand.u32 %s28, 1
        %s169 = scalar_lea.sflag [#allocation3], %s168
        %s170 = sand.u32 %s28, 1
        %s171 = smul.addr %s170, 4
        %s172 = scalar_lea.vmem [#allocation2], %s171
        %p173 = pneg %p41
        %p174 = pneg %p38
        %p175 = pneg %p62
        %p176 = pneg %p59
        %p177 = pneg %p83
        %p178 = pneg %p80
        %p179 = pneg %p109
        %p180 = pneg %p106
        %s181 = sand.u32 %s96, 1
        %s182 = scalar_lea.sflag [#allocation4], %s181
        %s183 = sand.u32 %s96, 1
        %s184 = smul.addr %s183, 2
        %s185 = scalar_lea.vmem [#allocation5], %s184
        %v186 = vld [vmem:[%s163] sm:$0xf]
        %vm187 = vcmp.ne.f32.partialorder %v186, %v186
        %v188 = vsel %vm187, 0.0, %v186
        %v189 = vld [vmem:[%s1] sm:$0xff]
        %v190 = vld [vmem:[%s1 + $0x8] sm:$0xff]
        %v191 = vld [vmem:[%s1 + $0x10] sm:$0xff]
        %v192 = vld [vmem:[%s1 + $0x18] sm:$0xff]
        %v193 = vld [vmem:[%s1 + $0x20] sm:$0xff]
        %v194 = vld [vmem:[%s1 + $0x28] sm:$0xff]
        %v195 = vld [vmem:[%s1 + $0x30] sm:$0xff]
        %v196 = vld [vmem:[%s1 + $0x38] sm:$0xff]
        %v197 = vld [vmem:[%s2] sm:$0xff]
        %v198 = vld [vmem:[%s2 + $0x8] sm:$0xff]
        %v199 = vld [vmem:[%s2 + $0x10] sm:$0xff]
        %v200 = vld [vmem:[%s2 + $0x18] sm:$0xff]
        %v201 = vld [vmem:[%s2 + $0x20] sm:$0xff]
        %v202 = vld [vmem:[%s2 + $0x28] sm:$0xff]
        %v203 = vld [vmem:[%s2 + $0x30] sm:$0xff]
        %v204 = vld [vmem:[%s2 + $0x38] sm:$0xff]
        %206 = vset.pattern.permute.xlu0 0
        %207 = vperm.xlu0 %206, %v197
        %v208 = vpop.permute.xlu0 %207
        %211 = vset.pattern.permute.xlu0 0
        %212 = vperm.xlu0 %211, %v198
        %v213 = vpop.permute.xlu0 %212
        %216 = vset.pattern.permute.xlu0 0
        %217 = vperm.xlu0 %216, %v199
        %v218 = vpop.permute.xlu0 %217
        %221 = vset.pattern.permute.xlu0 0
        %222 = vperm.xlu0 %221, %v200
        %v223 = vpop.permute.xlu0 %222
        %226 = vset.pattern.permute.xlu0 0
        %227 = vperm.xlu0 %226, %v201
        %v228 = vpop.permute.xlu0 %227
        %231 = vset.pattern.permute.xlu0 0
        %232 = vperm.xlu0 %231, %v202
        %v233 = vpop.permute.xlu0 %232
        %236 = vset.pattern.permute.xlu0 0
        %237 = vperm.xlu0 %236, %v203
        %v238 = vpop.permute.xlu0 %237
        %241 = vset.pattern.permute.xlu0 0
        %242 = vperm.xlu0 %241, %v204
        %v243 = vpop.permute.xlu0 %242
        %vm245 = vcmask 31744
        %v247 = vsel %vm245, %v189, 0
        %v250 = vsel %vm245, %v190, 0
        %v253 = vsel %vm245, %v191, 0
        %v256 = vsel %vm245, %v192, 0
        %v259 = vsel %vm245, %v193, 0
        %v262 = vsel %vm245, %v194, 0
        %v265 = vsel %vm245, %v195, 0
        %v268 = vsel %vm245, %v196, 0
        %vm270 = vcmask 1043456
        %v272 = vsel %vm270, %v188, 0
        %274 = vmatprep.subr.mxu0 0.0
        %275 = vmatpush1.msra.mxu0 %v272
        %276 = vmatprep.subr.mxu0 0.0
        %277 = vmatpush1.msra.mxu0 0.0
        %278 = vmatprep.subr.mxu0 0.0
        %279 = vmatpush1.msra.mxu0 0.0
        %280 = vmatprep.subr.mxu0 0.0
        %281 = vmatpush1.msra.mxu0 0.0
        %282 = vmatprep.subr.mxu0 0.0
        %283 = vmatpush1.msra.mxu0 0.0
        %284 = vmatprep.subr.mxu0 0.0
        %285 = vmatpush1.msra.mxu0 0.0
        %286 = vmatprep.subr.mxu0 0.0
        %287 = vmatpush1.msra.mxu0 0.0
        %288 = vmatprep.subr.mxu0 0.0
        %289 = vmatpush1.msra.mxu0 0.0
        %290 = vmatprep.subr.mxu0 0.0
        %291 = vmatpush1.msra.mxu0 0.0
        %292 = vmatprep.subr.mxu0 0.0
        %293 = vmatpush1.msra.mxu0 0.0
        %294 = vmatprep.subr.mxu0 0.0
        %295 = vmatpush1.msra.mxu0 0.0
        %296 = vmatprep.subr.mxu0 0.0
        %297 = vmatpush1.msra.mxu0 0.0
        %298 = vmatprep.subr.mxu0 0.0
        %299 = vmatpush1.msra.mxu0 0.0
        %300 = vmatprep.subr.mxu0 0.0
        %301 = vmatpush1.msra.mxu0 0.0
        %302 = vmatprep.subr.mxu0 0.0
        %303 = vmatpush1.msra.mxu0 0.0
        %304 = vmatprep.subr.mxu0 0.0
        %305 = vmatpush1.msra.mxu0 0.0
        %306 = vmatprep.subr.mxu0 0.0
        %307 = vmatpush1.msra.mxu0 0.0
        %308 = vmatprep.subr.mxu0 0.0
        %309 = vmatpush1.msra.mxu0 0.0
        %310 = vmatprep.subr.mxu0 0.0
        %311 = vmatpush1.msra.mxu0 0.0
        %312 = vmatprep.subr.mxu0 0.0
        %313 = vmatpush1.msra.mxu0 0.0
        %314 = vmatprep.subr.mxu0 0.0
        %315 = vmatpush1.msra.mxu0 0.0
        %316 = vmatprep.subr.mxu0 0.0
        %317 = vmatpush1.msra.mxu0 0.0
        %318 = vmatprep.subr.mxu0 0.0
        %319 = vmatpush1.msra.mxu0 0.0
        %320 = vmatprep.subr.mxu0 0.0
        %321 = vmatpush1.msra.mxu0 0.0
        %322 = vmatprep.subr.mxu0 0.0
        %323 = vmatpush1.msra.mxu0 0.0
        %324 = vmatprep.subr.mxu0 0.0
        %325 = vmatpush1.msra.mxu0 0.0
        %326 = vmatprep.subr.mxu0 0.0
        %327 = vmatpush1.msra.mxu0 0.0
        %328 = vmatprep.subr.mxu0 0.0
        %329 = vmatpush1.msra.mxu0 0.0
        %330 = vmatprep.subr.mxu0 0.0
        %331 = vmatpush1.msra.mxu0 0.0
        %332 = vmatprep.subr.mxu0 0.0
        %333 = vmatpush1.msra.mxu0 0.0
        %334 = vmatprep.subr.mxu0 0.0
        %335 = vmatpush1.msra.mxu0 0.0
        %336 = vmatprep.subr.mxu0 0.0
        %337 = vmatpush1.msra.mxu0 0.0
        %338 = vmatprep.mubr.f32.mxu0 0.0
        %339 = vmatmul.mubr.f32.gmra.mrb[0].mxu0 %v247
        %v340 = vpop.f32.mrb[0].mxu0
        %v341 = vadd.f32 %v208, %v340
        %v342 = vpop.f32.mrb[0].mxu0
        %343 = vmatprep.mubr.f32.mxu0 0.0
        %344 = vmatmul.mubr.f32.gmra.mrb[0].mxu0 %v250
        %v345 = vpop.f32.mrb[0].mxu0
        %v346 = vadd.f32 %v213, %v345
        %v347 = vpop.f32.mrb[0].mxu0
        %348 = vmatprep.mubr.f32.mxu0 0.0
        %349 = vmatmul.mubr.f32.gmra.mrb[0].mxu0 %v253
        %v350 = vpop.f32.mrb[0].mxu0
        %v351 = vadd.f32 %v218, %v350
        %v352 = vpop.f32.mrb[0].mxu0
        %353 = vmatprep.mubr.f32.mxu0 0.0
        %354 = vmatmul.mubr.f32.gmra.mrb[0].mxu0 %v256
        %v355 = vpop.f32.mrb[0].mxu0
        %v356 = vadd.f32 %v223, %v355
        %v357 = vpop.f32.mrb[0].mxu0
        %358 = vmatprep.mubr.f32.mxu0 0.0
        %359 = vmatmul.mubr.f32.gmra.mrb[0].mxu0 %v259
        %v360 = vpop.f32.mrb[0].mxu0
        %v361 = vadd.f32 %v228, %v360
        %v362 = vpop.f32.mrb[0].mxu0
        %363 = vmatprep.mubr.f32.mxu0 0.0
        %364 = vmatmul.mubr.f32.gmra.mrb[0].mxu0 %v262
        %v365 = vpop.f32.mrb[0].mxu0
        %v366 = vadd.f32 %v233, %v365
        %v367 = vpop.f32.mrb[0].mxu0
        %368 = vmatprep.mubr.f32.mxu0 0.0
        %369 = vmatmul.mubr.f32.gmra.mrb[0].mxu0 %v265
        %v370 = vpop.f32.mrb[0].mxu0
        %v371 = vadd.f32 %v238, %v370
        %v372 = vpop.f32.mrb[0].mxu0
        %373 = vmatprep.mubr.f32.mxu0 0.0
        %374 = vmatmul.mubr.f32.gmra.mrb[0].mxu0 %v268
        %v375 = vpop.f32.mrb[0].mxu0
        %v376 = vadd.f32 %v243, %v375
        %v377 = vpop.f32.mrb[0].mxu0
        %378 = vdwg.mxu0
        %v379 = vmax.f32 %v341, 0.0
        %v380 = vmax.f32 %v346, 0.0
        %v381 = vmax.f32 %v351, 0.0
        %v382 = vmax.f32 %v356, 0.0
        %v383 = vmax.f32 %v361, 0.0
        %v384 = vmax.f32 %v366, 0.0
        %v385 = vmax.f32 %v371, 0.0
        %v386 = vmax.f32 %v376, 0.0
        %v387 = vld [vmem:[%s1 + $0x40] sm:$0xff]
        %v388 = vld [vmem:[%s1 + $0x48] sm:$0xff]
        %v389 = vld [vmem:[%s1 + $0x50] sm:$0xff]
        %v390 = vld [vmem:[%s1 + $0x58] sm:$0xff]
        %v391 = vld [vmem:[%s1 + $0x60] sm:$0xff]
        %v392 = vld [vmem:[%s1 + $0x68] sm:$0xff]
        %v393 = vld [vmem:[%s1 + $0x70] sm:$0xff]
        %v394 = vld [vmem:[%s1 + $0x78] sm:$0xff]
        %v395 = vld [vmem:[%s2 + $0x40] sm:$0xff]
        %v396 = vld [vmem:[%s2 + $0x48] sm:$0xff]
        %v397 = vld [vmem:[%s2 + $0x50] sm:$0xff]
        %v398 = vld [vmem:[%s2 + $0x58] sm:$0xff]
        %v399 = vld [vmem:[%s2 + $0x60] sm:$0xff]
        %v400 = vld [vmem:[%s2 + $0x68] sm:$0xff]
        %v401 = vld [vmem:[%s2 + $0x70] sm:$0xff]
        %v402 = vld [vmem:[%s2 + $0x78] sm:$0xff]
        %404 = vset.pattern.permute.xlu0 0
        %405 = vperm.xlu0 %404, %v395
        %v406 = vpop.permute.xlu0 %405
        %409 = vset.pattern.permute.xlu0 0
        %410 = vperm.xlu0 %409, %v396
        %v411 = vpop.permute.xlu0 %410
        %414 = vset.pattern.permute.xlu0 0
        %415 = vperm.xlu0 %414, %v397
        %v416 = vpop.permute.xlu0 %415
        %419 = vset.pattern.permute.xlu0 0
        %420 = vperm.xlu0 %419, %v398
        %v421 = vpop.permute.xlu0 %420
        %424 = vset.pattern.permute.xlu0 0
        %425 = vperm.xlu0 %424, %v399
        %v426 = vpop.permute.xlu0 %425
        %429 = vset.pattern.permute.xlu0 0
        %430 = vperm.xlu0 %429, %v400
        %v431 = vpop.permute.xlu0 %430
        %434 = vset.pattern.permute.xlu0 0
        %435 = vperm.xlu0 %434, %v401
        %v436 = vpop.permute.xlu0 %435
        %439 = vset.pattern.permute.xlu0 0
        %440 = vperm.xlu0 %439, %v402
        %v441 = vpop.permute.xlu0 %440
        %vm443 = vcmask 523264
        %v445 = vsel %vm443, %v387, 0
        %v448 = vsel %vm443, %v388, 0
        %v451 = vsel %vm443, %v389, 0
        %v454 = vsel %vm443, %v390, 0
        %v457 = vsel %vm443, %v391, 0
        %v460 = vsel %vm443, %v392, 0
        %v463 = vsel %vm443, %v393, 0
        %v466 = vsel %vm443, %v394, 0
        %468 = vmatprep.subr.mxu0 0.0
        %469 = vmatpush1.msra.mxu0 %v379
        %470 = vmatprep.subr.mxu0 0.0
        %471 = vmatpush1.msra.mxu0 %v380
        %472 = vmatprep.subr.mxu0 0.0
        %473 = vmatpush1.msra.mxu0 %v381
        %474 = vmatprep.subr.mxu0 0.0
        %475 = vmatpush1.msra.mxu0 %v382
        %476 = vmatprep.subr.mxu0 0.0
        %477 = vmatpush1.msra.mxu0 %v383
        %478 = vmatprep.subr.mxu0 0.0
        %479 = vmatpush1.msra.mxu0 %v384
        %480 = vmatprep.subr.mxu0 0.0
        %481 = vmatpush1.msra.mxu0 %v385
        %482 = vmatprep.subr.mxu0 0.0
        %483 = vmatpush1.msra.mxu0 %v386
        %484 = vmatprep.subr.mxu0 0.0
        %485 = vmatpush1.msra.mxu0 0.0
        %486 = vmatprep.subr.mxu0 0.0
        %487 = vmatpush1.msra.mxu0 0.0
        %488 = vmatprep.subr.mxu0 0.0
        %489 = vmatpush1.msra.mxu0 0.0
        %490 = vmatprep.subr.mxu0 0.0
        %491 = vmatpush1.msra.mxu0 0.0
        %492 = vmatprep.subr.mxu0 0.0
        %493 = vmatpush1.msra.mxu0 0.0
        %494 = vmatprep.subr.mxu0 0.0
        %495 = vmatpush1.msra.mxu0 0.0
        %496 = vmatprep.subr.mxu0 0.0
        %497 = vmatpush1.msra.mxu0 0.0
        %498 = vmatprep.subr.mxu0 0.0
        %499 = vmatpush1.msra.mxu0 0.0
        %500 = vmatprep.subr.mxu0 0.0
        %501 = vmatpush1.msra.mxu0 0.0
        %502 = vmatprep.subr.mxu0 0.0
        %503 = vmatpush1.msra.mxu0 0.0
        %504 = vmatprep.subr.mxu0 0.0
        %505 = vmatpush1.msra.mxu0 0.0
        %506 = vmatprep.subr.mxu0 0.0
        %507 = vmatpush1.msra.mxu0 0.0
        %508 = vmatprep.subr.mxu0 0.0
        %509 = vmatpush1.msra.mxu0 0.0
        %510 = vmatprep.subr.mxu0 0.0
        %511 = vmatpush1.msra.mxu0 0.0
        %512 = vmatprep.subr.mxu0 0.0
        %513 = vmatpush1.msra.mxu0 0.0
        %514 = vmatprep.subr.mxu0 0.0
        %515 = vmatpush1.msra.mxu0 0.0
        %516 = vmatprep.subr.mxu0 0.0
        %517 = vmatpush1.msra.mxu0 0.0
        %518 = vmatprep.subr.mxu0 0.0
        %519 = vmatpush1.msra.mxu0 0.0
        %520 = vmatprep.subr.mxu0 0.0
        %521 = vmatpush1.msra.mxu0 0.0
        %522 = vmatprep.subr.mxu0 0.0
        %523 = vmatpush1.msra.mxu0 0.0
        %524 = vmatprep.subr.mxu0 0.0
        %525 = vmatpush1.msra.mxu0 0.0
        %526 = vmatprep.subr.mxu0 0.0
        %527 = vmatpush1.msra.mxu0 0.0
        %528 = vmatprep.subr.mxu0 0.0
        %529 = vmatpush1.msra.mxu0 0.0
        %530 = vmatprep.subr.mxu0 0.0
        %531 = vmatpush1.msra.mxu0 0.0
        %532 = vmatprep.mubr.f32.mxu0 0.0
        %533 = vmatmul.mubr.f32.gmra.mrb[0].mxu0 %v445
        %v534 = vpop.f32.mrb[0].mxu0
        %v535 = vadd.f32 %v406, %v534
        %v536 = vpop.f32.mrb[0].mxu0
        %537 = vmatprep.mubr.f32.mxu0 0.0
        %538 = vmatmul.mubr.f32.gmra.mrb[0].mxu0 %v448
        %v539 = vpop.f32.mrb[0].mxu0
        %v540 = vadd.f32 %v411, %v539
        %v541 = vpop.f32.mrb[0].mxu0
        %542 = vmatprep.mubr.f32.mxu0 0.0
        %543 = vmatmul.mubr.f32.gmra.mrb[0].mxu0 %v451
        %v544 = vpop.f32.mrb[0].mxu0
        %v545 = vadd.f32 %v416, %v544
        %v546 = vpop.f32.mrb[0].mxu0
        %547 = vmatprep.mubr.f32.mxu0 0.0
        %548 = vmatmul.mubr.f32.gmra.mrb[0].mxu0 %v454
        %v549 = vpop.f32.mrb[0].mxu0
        %v550 = vadd.f32 %v421, %v549
        %v551 = vpop.f32.mrb[0].mxu0
        %552 = vmatprep.mubr.f32.mxu0 0.0
        %553 = vmatmul.mubr.f32.gmra.mrb[0].mxu0 %v457
        %v554 = vpop.f32.mrb[0].mxu0
        %v555 = vadd.f32 %v426, %v554
        %v556 = vpop.f32.mrb[0].mxu0
        %557 = vmatprep.mubr.f32.mxu0 0.0
        %558 = vmatmul.mubr.f32.gmra.mrb[0].mxu0 %v460
        %v559 = vpop.f32.mrb[0].mxu0
        %v560 = vadd.f32 %v431, %v559
        %v561 = vpop.f32.mrb[0].mxu0
        %562 = vmatprep.mubr.f32.mxu0 0.0
        %563 = vmatmul.mubr.f32.gmra.mrb[0].mxu0 %v463
        %v564 = vpop.f32.mrb[0].mxu0
        %v565 = vadd.f32 %v436, %v564
        %v566 = vpop.f32.mrb[0].mxu0
        %567 = vmatprep.mubr.f32.mxu0 0.0
        %568 = vmatmul.mubr.f32.gmra.mrb[0].mxu0 %v466
        %v569 = vpop.f32.mrb[0].mxu0
        %v570 = vadd.f32 %v441, %v569
        %v571 = vpop.f32.mrb[0].mxu0
        %572 = vdwg.mxu0
        %v573 = vmax.f32 %v535, 0.0
        %v574 = vmax.f32 %v540, 0.0
        %v575 = vmax.f32 %v545, 0.0
        %v576 = vmax.f32 %v550, 0.0
        %v577 = vmax.f32 %v555, 0.0
        %v578 = vmax.f32 %v560, 0.0
        %v579 = vmax.f32 %v565, 0.0
        %v580 = vmax.f32 %v570, 0.0
        %v581 = vld [vmem:[%s1 + $0x80] sm:$0xff]
        %v582 = vld [vmem:[%s1 + $0x88] sm:$0xff]
        %v583 = vld [vmem:[%s1 + $0x90] sm:$0xff]
        %v584 = vld [vmem:[%s1 + $0x98] sm:$0xff]
        %v585 = vld [vmem:[%s1 + $0xa0] sm:$0xff]
        %v586 = vld [vmem:[%s1 + $0xa8] sm:$0xff]
        %v587 = vld [vmem:[%s1 + $0xb0] sm:$0xff]
        %v588 = vld [vmem:[%s1 + $0xb8] sm:$0xff]
        %v589 = vld [vmem:[%s1 + $0xc0] sm:$0xff]
        %v590 = vld [vmem:[%s2 + $0x80] sm:$0xff]
        %v591 = vld [vmem:[%s2 + $0x88] sm:$0xff]
        %v592 = vld [vmem:[%s2 + $0x90] sm:$0xff]
        %v593 = vld [vmem:[%s2 + $0x98] sm:$0xff]
        %v594 = vld [vmem:[%s2 + $0xa0] sm:$0xff]
        %v595 = vld [vmem:[%s2 + $0xa8] sm:$0xff]
        %v596 = vld [vmem:[%s2 + $0xb0] sm:$0xff]
        %v597 = vld [vmem:[%s2 + $0xb8] sm:$0xff]
        %v598 = vld [vmem:[%s2 + $0xc0] sm:$0xff]
        %600 = vset.pattern.permute.xlu0 0
        %601 = vperm.xlu0 %600, %v590
        %v602 = vpop.permute.xlu0 %601
        %605 = vset.pattern.permute.xlu0 0
        %606 = vperm.xlu0 %605, %v591
        %v607 = vpop.permute.xlu0 %606
        %610 = vset.pattern.permute.xlu0 0
        %611 = vperm.xlu0 %610, %v592
        %v612 = vpop.permute.xlu0 %611
        %615 = vset.pattern.permute.xlu0 0
        %616 = vperm.xlu0 %615, %v593
        %v617 = vpop.permute.xlu0 %616
        %620 = vset.pattern.permute.xlu0 0
        %621 = vperm.xlu0 %620, %v594
        %v622 = vpop.permute.xlu0 %621
        %625 = vset.pattern.permute.xlu0 0
        %626 = vperm.xlu0 %625, %v595
        %v627 = vpop.permute.xlu0 %626
        %630 = vset.pattern.permute.xlu0 0
        %631 = vperm.xlu0 %630, %v596
        %v632 = vpop.permute.xlu0 %631
        %635 = vset.pattern.permute.xlu0 0
        %636 = vperm.xlu0 %635, %v597
        %v637 = vpop.permute.xlu0 %636
        %640 = vset.pattern.permute.xlu0 0
        %641 = vperm.xlu0 %640, %v598
        %v642 = vpop.permute.xlu0 %641
        %v645 = vsel %vm443, %v581, 0
        %v648 = vsel %vm443, %v582, 0
        %v651 = vsel %vm443, %v583, 0
        %v654 = vsel %vm443, %v584, 0
        %v657 = vsel %vm443, %v585, 0
        %v660 = vsel %vm443, %v586, 0
        %v663 = vsel %vm443, %v587, 0
        %v666 = vsel %vm443, %v588, 0
        %v669 = vsel %vm443, %v589, 0
        %671 = vmatprep.subr.mxu0 0.0
        %672 = vmatpush1.msra.mxu0 %v573
        %673 = vmatprep.subr.mxu0 0.0
        %674 = vmatpush1.msra.mxu0 %v574
        %675 = vmatprep.subr.mxu0 0.0
        %676 = vmatpush1.msra.mxu0 %v575
        %677 = vmatprep.subr.mxu0 0.0
        %678 = vmatpush1.msra.mxu0 %v576
        %679 = vmatprep.subr.mxu0 0.0
        %680 = vmatpush1.msra.mxu0 %v577
        %681 = vmatprep.subr.mxu0 0.0
        %682 = vmatpush1.msra.mxu0 %v578
        %683 = vmatprep.subr.mxu0 0.0
        %684 = vmatpush1.msra.mxu0 %v579
        %685 = vmatprep.subr.mxu0 0.0
        %686 = vmatpush1.msra.mxu0 %v580
        %687 = vmatprep.subr.mxu0 0.0
        %688 = vmatpush1.msra.mxu0 0.0
        %689 = vmatprep.subr.mxu0 0.0
        %690 = vmatpush1.msra.mxu0 0.0
        %691 = vmatprep.subr.mxu0 0.0
        %692 = vmatpush1.msra.mxu0 0.0
        %693 = vmatprep.subr.mxu0 0.0
        %694 = vmatpush1.msra.mxu0 0.0
        %695 = vmatprep.subr.mxu0 0.0
        %696 = vmatpush1.msra.mxu0 0.0
        %697 = vmatprep.subr.mxu0 0.0
        %698 = vmatpush1.msra.mxu0 0.0
        %699 = vmatprep.subr.mxu0 0.0
        %700 = vmatpush1.msra.mxu0 0.0
        %701 = vmatprep.subr.mxu0 0.0
        %702 = vmatpush1.msra.mxu0 0.0
        %703 = vmatprep.subr.mxu0 0.0
        %704 = vmatpush1.msra.mxu0 0.0
        %705 = vmatprep.subr.mxu0 0.0
        %706 = vmatpush1.msra.mxu0 0.0
        %707 = vmatprep.subr.mxu0 0.0
        %708 = vmatpush1.msra.mxu0 0.0
        %709 = vmatprep.subr.mxu0 0.0
        %710 = vmatpush1.msra.mxu0 0.0
        %711 = vmatprep.subr.mxu0 0.0
        %712 = vmatpush1.msra.mxu0 0.0
        %713 = vmatprep.subr.mxu0 0.0
        %714 = vmatpush1.msra.mxu0 0.0
        %715 = vmatprep.subr.mxu0 0.0
        %716 = vmatpush1.msra.mxu0 0.0
        %717 = vmatprep.subr.mxu0 0.0
        %718 = vmatpush1.msra.mxu0 0.0
        %719 = vmatprep.subr.mxu0 0.0
        %720 = vmatpush1.msra.mxu0 0.0
        %721 = vmatprep.subr.mxu0 0.0
        %722 = vmatpush1.msra.mxu0 0.0
        %723 = vmatprep.subr.mxu0 0.0
        %724 = vmatpush1.msra.mxu0 0.0
        %725 = vmatprep.subr.mxu0 0.0
        %726 = vmatpush1.msra.mxu0 0.0
        %727 = vmatprep.subr.mxu0 0.0
        %728 = vmatpush1.msra.mxu0 0.0
        %729 = vmatprep.subr.mxu0 0.0
        %730 = vmatpush1.msra.mxu0 0.0
        %731 = vmatprep.subr.mxu0 0.0
        %732 = vmatpush1.msra.mxu0 0.0
        %733 = vmatprep.subr.mxu0 0.0
        %734 = vmatpush1.msra.mxu0 0.0
        %735 = vmatprep.mubr.f32.mxu0 0.0
        %736 = vmatmul.mubr.f32.gmra.mrb[0].mxu0 %v645
        %v737 = vpop.f32.mrb[0].mxu0
        %v738 = vadd.f32 %v602, %v737
        %v739 = vpop.f32.mrb[0].mxu0
        %740 = vmatprep.mubr.f32.mxu0 0.0
        %741 = vmatmul.mubr.f32.gmra.mrb[0].mxu0 %v648
        %v742 = vpop.f32.mrb[0].mxu0
        %v743 = vadd.f32 %v607, %v742
        %v744 = vpop.f32.mrb[0].mxu0
        %745 = vmatprep.mubr.f32.mxu0 0.0
        %746 = vmatmul.mubr.f32.gmra.mrb[0].mxu0 %v651
        %v747 = vpop.f32.mrb[0].mxu0
        %v748 = vadd.f32 %v612, %v747
        %v749 = vpop.f32.mrb[0].mxu0
        %750 = vmatprep.mubr.f32.mxu0 0.0
        %751 = vmatmul.mubr.f32.gmra.mrb[0].mxu0 %v654
        %v752 = vpop.f32.mrb[0].mxu0
        %v753 = vadd.f32 %v617, %v752
        %v754 = vpop.f32.mrb[0].mxu0
        %755 = vmatprep.mubr.f32.mxu0 0.0
        %756 = vmatmul.mubr.f32.gmra.mrb[0].mxu0 %v657
        %v757 = vpop.f32.mrb[0].mxu0
        %v758 = vadd.f32 %v622, %v757
        %v759 = vpop.f32.mrb[0].mxu0
        %760 = vmatprep.mubr.f32.mxu0 0.0
        %761 = vmatmul.mubr.f32.gmra.mrb[0].mxu0 %v660
        %v762 = vpop.f32.mrb[0].mxu0
        %v763 = vadd.f32 %v627, %v762
        %v764 = vpop.f32.mrb[0].mxu0
        %765 = vmatprep.mubr.f32.mxu0 0.0
        %766 = vmatmul.mubr.f32.gmra.mrb[0].mxu0 %v663
        %v767 = vpop.f32.mrb[0].mxu0
        %v768 = vadd.f32 %v632, %v767
        %v769 = vpop.f32.mrb[0].mxu0
        %770 = vmatprep.mubr.f32.mxu0 0.0
        %771 = vmatmul.mubr.f32.gmra.mrb[0].mxu0 %v666
        %v772 = vpop.f32.mrb[0].mxu0
        %v773 = vadd.f32 %v637, %v772
        %v774 = vpop.f32.mrb[0].mxu0
        %775 = vmatprep.mubr.f32.mxu0 0.0
        %776 = vmatmul.mubr.f32.gmra.mrb[0].mxu0 %v669
        %v777 = vpop.f32.mrb[0].mxu0
        %v778 = vadd.f32 %v642, %v777
        %v779 = vpop.f32.mrb[0].mxu0
        %780 = vdwg.mxu0
        %vm781 = vcmp.gt.f32.partialorder %v738, 0.0
        %vm782 = vcmp.gt.f32.partialorder %v743, 0.0
        %vm783 = vcmp.gt.f32.partialorder %v748, 0.0
        %vm784 = vcmp.gt.f32.partialorder %v753, 0.0
        %vm785 = vcmp.gt.f32.partialorder %v758, 0.0
        %vm786 = vcmp.gt.f32.partialorder %v763, 0.0
        %vm787 = vcmp.gt.f32.partialorder %v768, 0.0
        %vm788 = vcmp.gt.f32.partialorder %v773, 0.0
        %v789 = vmul.f32 %v738, 0.01
        %v790 = vmul.f32 %v743, 0.01
        %v791 = vmul.f32 %v748, 0.01
        %v792 = vmul.f32 %v753, 0.01
        %v793 = vmul.f32 %v758, 0.01
        %v794 = vmul.f32 %v763, 0.01
        %v795 = vmul.f32 %v768, 0.01
        %v796 = vmul.f32 %v773, 0.01
        %v797 = vsel %vm781, %v738, %v789
        %v798 = vsel %vm782, %v743, %v790
        %v799 = vsel %vm783, %v748, %v791
        %v800 = vsel %vm784, %v753, %v792
        %v801 = vsel %vm785, %v758, %v793
        %v802 = vsel %vm786, %v763, %v794
        %v803 = vsel %vm787, %v768, %v795
        %v804 = vsel %vm788, %v773, %v796
        %v805 = vld [vmem:[%s1 + $0xc8] sm:$0xff]
        %v806 = vld [vmem:[%s1 + $0xd0] sm:$0xff]
        %v807 = vld [vmem:[%s1 + $0xd8] sm:$0xff]
        %v808 = vld [vmem:[%s1 + $0xe0] sm:$0xff]
        %v809 = vld [vmem:[%s2 + $0xc8] sm:$0xff]
        %v810 = vld [vmem:[%s2 + $0xd0] sm:$0xff]
        %v811 = vld [vmem:[%s2 + $0xd8] sm:$0xff]
        %v812 = vld [vmem:[%s2 + $0xe0] sm:$0xff]
        %814 = vset.pattern.permute.xlu0 0
        %815 = vperm.xlu0 %814, %v809
        %v816 = vpop.permute.xlu0 %815
        %819 = vset.pattern.permute.xlu0 0
        %820 = vperm.xlu0 %819, %v810
        %v821 = vpop.permute.xlu0 %820
        %824 = vset.pattern.permute.xlu0 0
        %825 = vperm.xlu0 %824, %v811
        %v826 = vpop.permute.xlu0 %825
        %829 = vset.pattern.permute.xlu0 0
        %830 = vperm.xlu0 %829, %v812
        %v831 = vpop.permute.xlu0 %830
        %v834 = vsel %vm443, %v805, 0
        %v837 = vsel %vm443, %v806, 0
        %v840 = vsel %vm443, %v807, 0
        %v843 = vsel %vm443, %v808, 0
        %845 = vmatprep.subr.mxu0 0.0
        %846 = vmatpush1.msra.mxu0 %v797
        %847 = vmatprep.subr.mxu0 0.0
        %848 = vmatpush1.msra.mxu0 %v798
        %849 = vmatprep.subr.mxu0 0.0
        %850 = vmatpush1.msra.mxu0 %v799
        %851 = vmatprep.subr.mxu0 0.0
        %852 = vmatpush1.msra.mxu0 %v800
        %853 = vmatprep.subr.mxu0 0.0
        %854 = vmatpush1.msra.mxu0 %v801
        %855 = vmatprep.subr.mxu0 0.0
        %856 = vmatpush1.msra.mxu0 %v802
        %857 = vmatprep.subr.mxu0 0.0
        %858 = vmatpush1.msra.mxu0 %v803
        %859 = vmatprep.subr.mxu0 0.0
        %860 = vmatpush1.msra.mxu0 %v804
        %861 = vmatprep.subr.mxu0 0.0
        %862 = vmatpush1.msra.mxu0 0.0
        %863 = vmatprep.subr.mxu0 0.0
        %864 = vmatpush1.msra.mxu0 0.0
        %865 = vmatprep.subr.mxu0 0.0
        %866 = vmatpush1.msra.mxu0 0.0
        %867 = vmatprep.subr.mxu0 0.0
        %868 = vmatpush1.msra.mxu0 0.0
        %869 = vmatprep.subr.mxu0 0.0
        %870 = vmatpush1.msra.mxu0 0.0
        %871 = vmatprep.subr.mxu0 0.0
        %872 = vmatpush1.msra.mxu0 0.0
        %873 = vmatprep.subr.mxu0 0.0
        %874 = vmatpush1.msra.mxu0 0.0
        %875 = vmatprep.subr.mxu0 0.0
        %876 = vmatpush1.msra.mxu0 0.0
        %877 = vmatprep.subr.mxu0 0.0
        %878 = vmatpush1.msra.mxu0 0.0
        %879 = vmatprep.subr.mxu0 0.0
        %880 = vmatpush1.msra.mxu0 0.0
        %881 = vmatprep.subr.mxu0 0.0
        %882 = vmatpush1.msra.mxu0 0.0
        %883 = vmatprep.subr.mxu0 0.0
        %884 = vmatpush1.msra.mxu0 0.0
        %885 = vmatprep.subr.mxu0 0.0
        %886 = vmatpush1.msra.mxu0 0.0
        %887 = vmatprep.subr.mxu0 0.0
        %888 = vmatpush1.msra.mxu0 0.0
        %889 = vmatprep.subr.mxu0 0.0
        %890 = vmatpush1.msra.mxu0 0.0
        %891 = vmatprep.subr.mxu0 0.0
        %892 = vmatpush1.msra.mxu0 0.0
        %893 = vmatprep.subr.mxu0 0.0
        %894 = vmatpush1.msra.mxu0 0.0
        %895 = vmatprep.subr.mxu0 0.0
        %896 = vmatpush1.msra.mxu0 0.0
        %897 = vmatprep.subr.mxu0 0.0
        %898 = vmatpush1.msra.mxu0 0.0
        %899 = vmatprep.subr.mxu0 0.0
        %900 = vmatpush1.msra.mxu0 0.0
        %901 = vmatprep.subr.mxu0 0.0
        %902 = vmatpush1.msra.mxu0 0.0
        %903 = vmatprep.subr.mxu0 0.0
        %904 = vmatpush1.msra.mxu0 0.0
        %905 = vmatprep.subr.mxu0 0.0
        %906 = vmatpush1.msra.mxu0 0.0
        %907 = vmatprep.subr.mxu0 0.0
        %908 = vmatpush1.msra.mxu0 0.0
        %909 = vmatprep.mubr.f32.mxu0 0.0
        %910 = vmatmul.mubr.f32.gmra.mrb[0].mxu0 %v834
        %v911 = vpop.f32.mrb[0].mxu0
        %v912 = vadd.f32 %v816, %v911
        %v913 = vpop.f32.mrb[0].mxu0
        %914 = vmatprep.mubr.f32.mxu0 0.0
        %915 = vmatmul.mubr.f32.gmra.mrb[0].mxu0 %v837
        %v916 = vpop.f32.mrb[0].mxu0
        %v917 = vadd.f32 %v821, %v916
        %v918 = vpop.f32.mrb[0].mxu0
        %919 = vmatprep.mubr.f32.mxu0 0.0
        %920 = vmatmul.mubr.f32.gmra.mrb[0].mxu0 %v840
        %v921 = vpop.f32.mrb[0].mxu0
        %v922 = vadd.f32 %v826, %v921
        %v923 = vpop.f32.mrb[0].mxu0
        %924 = vmatprep.mubr.f32.mxu0 0.0
        %925 = vmatmul.mubr.f32.gmra.mrb[0].mxu0 %v843
        %v926 = vpop.f32.mrb[0].mxu0
        %v927 = vadd.f32 %v831, %v926
        %v928 = vpop.f32.mrb[0].mxu0
        %929 = vdwg.mxu0
        %vm930 = vcmp.gt.f32.partialorder %v912, 0.0
        %vm931 = vcmp.gt.f32.partialorder %v917, 0.0
        %vm932 = vcmp.gt.f32.partialorder %v922, 0.0
        %vm933 = vcmp.gt.f32.partialorder %v927, 0.0
        %v934 = vmul.f32 %v912, 0.01
        %v935 = vmul.f32 %v917, 0.01
        %v936 = vmul.f32 %v922, 0.01
        %v937 = vmul.f32 %v927, 0.01
        %v938 = vsel %vm930, %v912, %v934
        %v939 = vsel %vm931, %v917, %v935
        %v940 = vsel %vm932, %v922, %v936
        %v941 = vsel %vm933, %v927, %v937
        %v942 = vld [vmem:[%s1 + $0xe8] sm:$0xff]
        %v943 = vld [vmem:[%s2 + $0xe8] sm:$0xff]
        %945 = vset.pattern.permute.xlu0 0
        %946 = vperm.xlu0 %945, %v943
        %v947 = vpop.permute.xlu0 %946
        %vm949 = vcmask 261120
        %v951 = vsel %vm949, %v942, 0
        %953 = vmatprep.subr.mxu0 0.0
        %954 = vmatpush1.msra.mxu0 %v938
        %955 = vmatprep.subr.mxu0 0.0
        %956 = vmatpush1.msra.mxu0 %v939
        %957 = vmatprep.subr.mxu0 0.0
        %958 = vmatpush1.msra.mxu0 %v940
        %959 = vmatprep.subr.mxu0 0.0
        %960 = vmatpush1.msra.mxu0 %v941
        %961 = vmatprep.subr.mxu0 0.0
        %962 = vmatpush1.msra.mxu0 0.0
        %963 = vmatprep.subr.mxu0 0.0
        %964 = vmatpush1.msra.mxu0 0.0
        %965 = vmatprep.subr.mxu0 0.0
        %966 = vmatpush1.msra.mxu0 0.0
        %967 = vmatprep.subr.mxu0 0.0
        %968 = vmatpush1.msra.mxu0 0.0
        %969 = vmatprep.subr.mxu0 0.0
        %970 = vmatpush1.msra.mxu0 0.0
        %971 = vmatprep.subr.mxu0 0.0
        %972 = vmatpush1.msra.mxu0 0.0
        %973 = vmatprep.subr.mxu0 0.0
        %974 = vmatpush1.msra.mxu0 0.0
        %975 = vmatprep.subr.mxu0 0.0
        %976 = vmatpush1.msra.mxu0 0.0
        %977 = vmatprep.subr.mxu0 0.0
        %978 = vmatpush1.msra.mxu0 0.0
        %979 = vmatprep.subr.mxu0 0.0
        %980 = vmatpush1.msra.mxu0 0.0
        %981 = vmatprep.subr.mxu0 0.0
        %982 = vmatpush1.msra.mxu0 0.0
        %983 = vmatprep.subr.mxu0 0.0
        %984 = vmatpush1.msra.mxu0 0.0
        %985 = vmatprep.subr.mxu0 0.0
        %986 = vmatpush1.msra.mxu0 0.0
        %987 = vmatprep.subr.mxu0 0.0
        %988 = vmatpush1.msra.mxu0 0.0
        %989 = vmatprep.subr.mxu0 0.0
        %990 = vmatpush1.msra.mxu0 0.0
        %991 = vmatprep.subr.mxu0 0.0
        %992 = vmatpush1.msra.mxu0 0.0
        %993 = vmatprep.subr.mxu0 0.0
        %994 = vmatpush1.msra.mxu0 0.0
        %995 = vmatprep.subr.mxu0 0.0
        %996 = vmatpush1.msra.mxu0 0.0
        %997 = vmatprep.subr.mxu0 0.0
        %998 = vmatpush1.msra.mxu0 0.0
        %999 = vmatprep.subr.mxu0 0.0
        %1000 = vmatpush1.msra.mxu0 0.0
        %1001 = vmatprep.subr.mxu0 0.0
        %1002 = vmatpush1.msra.mxu0 0.0
        %1003 = vmatprep.subr.mxu0 0.0
        %1004 = vmatpush1.msra.mxu0 0.0
        %1005 = vmatprep.subr.mxu0 0.0
        %1006 = vmatpush1.msra.mxu0 0.0
        %1007 = vmatprep.subr.mxu0 0.0
        %1008 = vmatpush1.msra.mxu0 0.0
        %1009 = vmatprep.subr.mxu0 0.0
        %1010 = vmatpush1.msra.mxu0 0.0
        %1011 = vmatprep.subr.mxu0 0.0
        %1012 = vmatpush1.msra.mxu0 0.0
        %1013 = vmatprep.subr.mxu0 0.0
        %1014 = vmatpush1.msra.mxu0 0.0
        %1015 = vmatprep.subr.mxu0 0.0
        %1016 = vmatpush1.msra.mxu0 0.0
        %1017 = vmatprep.mubr.f32.mxu0 0.0
        %1018 = vmatmul.mubr.f32.gmra.mrb[0].mxu0 %v951
        %v1019 = vpop.f32.mrb[0].mxu0
        %v1020 = vadd.f32 %v947, %v1019
        %v1021 = vpop.f32.mrb[0].mxu0
        %1022 = vdwg.mxu0
        %1023 = vst [vmem:[%s185] sm:$0x1] %v778
        %1024 = vst [vmem:[%s185 + $0x1] sm:$0x1] %v1020
        %s1025 = sand.u32 %s96, 1
        %s1026 = scalar_lea.sflag [#allocation4], %s1025
        %s1027 = sand.u32 %s96, 1
        %s1028 = smul.addr %s1027, 2
        %s1029 = scalar_lea.vmem [#allocation5], %s1028
        // Predicated region
        $region37: #{tpu_custom_call.1} parent=31 // pred_check
          %p1030 = pneg %p106
        $region38: #{tpu_custom_call.1} parent=31 // pred_check_branch
          %1032 = sbr.rel (%p1030) target = $region40
        $region39: #{tpu_custom_call.1} parent=31 // pred_region
          %s1034 = ssub.s32 32, 32
          %1035 = vsyncadd %s1026, %s1034
          %s1036 = smul.addr %s20, 32
          %s1037 = scalar_lea.hbm %s3, %s1036
          %s1039 = sshll.u32 %s1029, 4
          %s1040 = int_to_ptr.vmem [resolvable:$true] %s1039
          %1042 = dma.vmem_to_hbm [thread:$0]  %s1040, 32, %s1037, %s1026
        $region40: #{tpu_custom_call.1} parent=31 // pred_fallthru
          _
      $region32: #{tpu_custom_call.1} parent=5 // pred_fallthru
        _
      %p1043 = scmp.le.s32.totalorder 2, %s15
      // Predicated region
      $region41: #{tpu_custom_call.1} parent=5 // pred_check
        %p1044 = pneg %p1043
      $region42: #{tpu_custom_call.1} parent=5 // pred_check_branch
        %1046 = sbr.rel (%p1044) target = $region44
      $region43: #{tpu_custom_call.1} parent=5 // pred_region
        %s1047 = ssub.s32 %s15, 2
        // Predicated region
        $region45: #{tpu_custom_call.1} parent=43 // pred_check
          %p1048 = pneg %p112
        $region46: #{tpu_custom_call.1} parent=43 // pred_check_branch
          %1050 = sbr.rel (%p1048) target = $region48
        $region47: #{tpu_custom_call.1} parent=43 // pred_region
          %s1051 = sand.u32 %s97, 1
          %s1052 = scalar_lea.sflag [#allocation4], %s1051
          %s1053 = sand.u32 %s97, 1
          %s1054 = smul.addr %s1053, 2
          %s1055 = scalar_lea.vmem [#allocation5], %s1054
          %1056 = dma.done %s1052, 32
        $region48: #{tpu_custom_call.1} parent=43 // pred_fallthru
          _
      $region44: #{tpu_custom_call.1} parent=5 // pred_fallthru
        _
    $region6: #{tpu_custom_call.1} parent=1 // loop_footer
      %s19 = sadd.s32 1, %s15
    $region7: #{tpu_custom_call.1} parent=1 // loop_footer_branch
      %14 = sbr.rel target = $region3
    $region8: #{tpu_custom_call.1} parent=1 // loop_exit
      _
    %1057 = vsyncpa [#allocation3], 1
    %s1058 = scalar_lea.sflag [#allocation3], 1
    %1059 = vsyncpa %s1058, 1
    %1060 = vsyncpa [#allocation4], 1
    %s1061 = scalar_lea.sflag [#allocation4], 1
    %1062 = vsyncpa %s1061, 1

</llo_original>
